<compile_context>
chip_gen: v7x
topology: tpu7x:2x2x1
jax: 0.10.0
libtpu: 0.0.40
codegen_flags: <defaults>
</compile_context>

<pallas_src>
import jax
import jax.numpy as jnp
from jax import lax
from jax.experimental import pallas as pl
from jax.experimental.pallas import tpu as pltpu


def _patch_embed_kernel(x_ref, w_ref, pos_ref, cls_ref, o_ref):
    # x_ref:   (ipt, P, D_pad)    patches in compute dtype (streamed per grid step)
    # w_ref:   (D_pad, E_pad)     flattened conv weight; constant index -> resident
    # pos_ref: (P, E_pad)  f32    patch position embedding with conv bias folded in; resident
    # cls_ref: (1, E_pad)  f32    cls_token + position_embedding[P]; resident
    # o_ref:   (ipt, P+1, E_pad)  output block (cls row appended LAST, as in torch.cat)
    w = w_ref[...]
    pos = pos_ref[...]
    cls_row = cls_ref[...].astype(o_ref.dtype)          # (1, E_pad), cast once
    ipt = o_ref.shape[0]
    P = pos_ref.shape[0]
    for i in range(ipt):                                 # static unroll: whole images per tile
        acc = jnp.dot(x_ref[i], w, preferred_element_type=jnp.float32)   # MXU, f32 accumulate
        o_ref[i, :P, :] = (acc + pos).astype(o_ref.dtype)                # single f32 epilogue add
        o_ref[i, P:P + 1, :] = cls_row                                   # cls written in-kernel
    # TODO(synk): dropout(p=0.1) is a no-op at inference; training-mode dropout
    # (pltpu.prng_random_bits mask) intentionally omitted.
    # TODO(synk): constant-index inputs (w, pos, cls) could use pipeline_mode=pl.Buffered(1)
    # to drop their second VMEM buffer if VMEM ever becomes the limiter (v7x, huge E).


def patch_embedding_forward(x, conv_w, conv_b, cls_token, pos_embed, patch_size,
                            *, compute_dtype=jnp.float32, out_dtype=None,
                            tile_rows=1024):
    """x: [B, C, H, W]. Returns [B, P+1, E] in `out_dtype` (defaults to compute_dtype).

    compute_dtype: bf16 is the recommended default on v5e/v6e/v7x (f32 accumulation
    is kept inside the kernel either way); f32 gives bit-tight numerics for testing.
    tile_rows: target patch-rows per grid step; actual tile is a whole-image multiple
    of P and a divisor of B (no batch padding, >=2 grid steps whenever B >= 2).
    """
    B, C, H, W = x.shape
    E = conv_w.shape[0]
    p = patch_size
    hp, wp = H // p, W // p
    P = hp * wp
    D = C * p * p
    if out_dtype is None:
        out_dtype = compute_dtype

    # ---- patch extraction: cast FIRST so the materialized [B, P, D] patches array
    # (and its re-read by the kernel) is already in compute_dtype.
    # (c, kh, kw) flatten order matches Conv2d weight flattening.
    xc = x.astype(compute_dtype)
    patches = xc.reshape(B, C, hp, p, wp, p).transpose(0, 2, 4, 1, 3, 5).reshape(B, P, D)
    # TODO(synk): fully fuse the extraction into the kernel (BlockSpec over raw NCHW x
    # + in-kernel (c,kh,kw) flatten) to remove this HBM round trip of the input entirely.

    # ---- weight / pos / cls prep (layout plumbing; in production the flattened,
    # pre-transposed, pre-padded weight would be stored as a parameter at load time) ----
    w_flat = conv_w.reshape(E, D).T.astype(compute_dtype)                 # (D, E)
    pos_flat = pos_embed.reshape(P + 1, E).astype(jnp.float32)
    pos_patch = pos_flat[:P] + conv_b.reshape(1, E).astype(jnp.float32)   # fold conv bias into pos
    cls_row = cls_token.reshape(1, E).astype(jnp.float32) + pos_flat[P:P + 1]

    # Lane-dense padding on both the contraction (D) and output (E) axes.
    D_pad = ((D + 127) // 128) * 128
    E_pad = ((E + 127) // 128) * 128
    if D_pad != D:
        patches = jnp.pad(patches, ((0, 0), (0, 0), (0, D_pad - D)))
        w_flat = jnp.pad(w_flat, ((0, D_pad - D), (0, 0)))
    if E_pad != E:
        w_flat = jnp.pad(w_flat, ((0, 0), (0, E_pad - E)))
        pos_patch = jnp.pad(pos_patch, ((0, 0), (0, E_pad - E)))
        cls_row = jnp.pad(cls_row, ((0, 0), (0, E_pad - E)))

    # ---- tiling: whole images per step; divisor of B (no padding / output slice);
    # keep >=2 grid steps when B >= 2 so megacore (v7x) can split the grid.
    ipt_cap = max(1, tile_rows // P)
    if B >= 2:
        ipt_cap = min(ipt_cap, max(1, B // 2))
    ipt = max(d for d in range(1, ipt_cap + 1) if B % d == 0)
    num_tiles = B // ipt

    in_bytes = jnp.dtype(compute_dtype).itemsize
    o_bytes = jnp.dtype(out_dtype).itemsize
    flops = 2 * B * P * D_pad * E_pad
    bytes_accessed = (B * P * D_pad * in_bytes          # patches read
                      + D_pad * E_pad * in_bytes        # weight read
                      + (P + 1) * E_pad * 4             # pos + cls read
                      + B * (P + 1) * E_pad * o_bytes)  # output write

    # Per-step VMEM working set (double-buffered streamed blocks + resident inputs).
    vmem_need = (2 * ipt * P * D_pad * in_bytes
                 + 2 * ipt * (P + 1) * E_pad * o_bytes
                 + 2 * D_pad * E_pad * in_bytes
                 + 2 * (P + 1) * E_pad * 4)
    compiler_kwargs = dict(dimension_semantics=("parallel",))
    if vmem_need + vmem_need // 2 > 32 * 1024 * 1024:
        # Raise the scoped VMEM limit only when needed; cap so it stays legal on v7x (64 MiB).
        compiler_kwargs["vmem_limit_bytes"] = int(min(2 * vmem_need, 64 * 1024 * 1024))

    out = pl.pallas_call(
        _patch_embed_kernel,
        out_shape=jax.ShapeDtypeStruct((B, P + 1, E_pad), out_dtype),
        grid_spec=pltpu.PrefetchScalarGridSpec(
            num_scalar_prefetch=0,
            grid=(num_tiles,),
            in_specs=[
                pl.BlockSpec((ipt, P, D_pad), lambda i: (i, 0, 0)),      # streamed image tiles
                pl.BlockSpec((D_pad, E_pad), lambda i: (0, 0)),          # resident weight
                pl.BlockSpec((P, E_pad), lambda i: (0, 0)),              # resident pos+bias
                pl.BlockSpec((1, E_pad), lambda i: (0, 0)),              # resident cls+pos row
            ],
            out_specs=pl.BlockSpec((ipt, P + 1, E_pad), lambda i: (i, 0, 0)),
        ),
        compiler_params=pltpu.CompilerParams(**compiler_kwargs),
        cost_estimate=pl.CostEstimate(flops=flops, transcendentals=0,
                                      bytes_accessed=bytes_accessed),
    )(patches, w_flat, pos_patch, cls_row)

    # No concatenate, no batch slice; only strip lane padding when E isn't 128-aligned
    # (a no-op for real ViT widths 768/1024/1280).
    if E_pad != E:
        out = out[..., :E]
    return out


def _reference_forward(x, conv_w, conv_b, cls_token, pos_embed, patch_size):
    """Pure-JAX reference mirroring the PyTorch module (eval mode)."""
    B = x.shape[0]
    E = conv_w.shape[0]
    y = lax.conv_general_dilated(
        x, conv_w,
        window_strides=(patch_size, patch_size),
        padding="VALID",
        dimension_numbers=("NCHW", "OIHW", "NCHW"),
    ) + conv_b.reshape(1, E, 1, 1)                                # [B, E, hp, wp]
    y = y.reshape(B, E, -1).transpose(0, 2, 1)                    # [B, P, E]
    cls = jnp.broadcast_to(cls_token, (B, 1, E))
    y = jnp.concatenate([y, cls], axis=1)                         # [B, P+1, E]
    y = y + pos_embed
    return y


if __name__ == "__main__":
    # Small, consistent configuration: images_size=(16, 16, 4), patch=8, E=32, B=2
    B, C, H, W = 2, 4, 16, 16
    patch_size = 8
    E = 32
    P = (H // patch_size) * (W // patch_size)                     # 4 patches

    key = jax.random.PRNGKey(0)
    kx, kw, kb, kc, kp = jax.random.split(key, 5)

    x = jax.random.normal(kx, (B, C, H, W), dtype=jnp.float32)
    conv_w = jax.random.normal(kw, (E, C, patch_size, patch_size), dtype=jnp.float32) * 0.02
    conv_b = jax.random.normal(kb, (E,), dtype=jnp.float32) * 0.02
    cls_token = jax.random.uniform(kc, (1, 1, E), dtype=jnp.float32)       # torch.rand
    pos_embed = jax.random.uniform(kp, (1, P + 1, E), dtype=jnp.float32)   # torch.rand

    ref = _reference_forward(x, conv_w, conv_b, cls_token, pos_embed, patch_size)

    # f32 path (exact check vs. f32 conv reference).
    out = patch_embedding_forward(x, conv_w, conv_b, cls_token, pos_embed, patch_size)
    out = jax.block_until_ready(out)
    assert out.shape == (B, P + 1, E), out.shape
    assert jnp.allclose(out, ref, atol=1e-4, rtol=1e-4), float(jnp.max(jnp.abs(out - ref)))

    # bf16 compute + bf16 output path (recommended on all generations) — loose tolerance.
    out_bf16 = patch_embedding_forward(x, conv_w, conv_b, cls_token, pos_embed, patch_size,
                                       compute_dtype=jnp.bfloat16)
    out_bf16 = jax.block_until_ready(out_bf16)
    assert out_bf16.shape == (B, P + 1, E), out_bf16.shape
    assert jnp.allclose(out_bf16.astype(jnp.float32), ref, atol=1e-1, rtol=1e-1), \
        float(jnp.max(jnp.abs(out_bf16.astype(jnp.float32) - ref)))

    print("KERNEL_OK")
</pallas_src>

<mosaic_0001>
module attributes {stable_mosaic.version = 11 : i64} {
  func.func @_patch_embed_kernel(%arg0: i32, %arg1: memref<1x4x256xf32, #tpu.memory_space<vmem>>, %arg2: memref<256x128xf32, #tpu.memory_space<vmem>>, %arg3: memref<4x128xf32, #tpu.memory_space<vmem>>, %arg4: memref<1x128xf32, #tpu.memory_space<vmem>>, %arg5: memref<1x5x128xf32, #tpu.memory_space<vmem>>) attributes {dimension_semantics = [#tpu.dimension_semantics<parallel>], iteration_bounds = array<i64: 2>, scalar_prefetch = 0 : i64, scratch_operands = 0 : i64, tpu.core_type = #tpu.core_type<tc>, window_params = [{transform_indices = @transform_0, window_bounds = array<i64: 1, 4, 256>}, {pipeline_mode = #tpu.pipeline_mode<synchronous>, transform_indices = @transform_1, window_bounds = array<i64: 256, 128>}, {pipeline_mode = #tpu.pipeline_mode<synchronous>, transform_indices = @transform_2, window_bounds = array<i64: 4, 128>}, {pipeline_mode = #tpu.pipeline_mode<synchronous>, transform_indices = @transform_3, window_bounds = array<i64: 1, 128>}, {transform_indices = @transform_4, window_bounds = array<i64: 1, 5, 128>}]} {
    %c0 = arith.constant 0 : index
    %c0_0 = arith.constant 0 : index
    %0 = vector.load %arg2[%c0, %c0_0] : memref<256x128xf32, #tpu.memory_space<vmem>>, vector<256x128xf32>
    %c0_1 = arith.constant 0 : index
    %c0_2 = arith.constant 0 : index
    %1 = vector.load %arg3[%c0_1, %c0_2] : memref<4x128xf32, #tpu.memory_space<vmem>>, vector<4x128xf32>
    %c0_3 = arith.constant 0 : index
    %c0_4 = arith.constant 0 : index
    %2 = vector.load %arg4[%c0_3, %c0_4] : memref<1x128xf32, #tpu.memory_space<vmem>>, vector<1x128xf32>
    %c0_5 = arith.constant 0 : index
    %c0_6 = arith.constant 0 : index
    %c0_7 = arith.constant 0 : index
    %3 = vector.load %arg1[%c0_5, %c0_6, %c0_7] : memref<1x4x256xf32, #tpu.memory_space<vmem>>, vector<1x4x256xf32>
    %4 = vector.shape_cast %3 : vector<1x4x256xf32> to vector<4x256xf32>
    %cst = arith.constant dense<0.000000e+00> : vector<4x128xf32>
    %5 = tpu.matmul %4, %0, %cst {dimension_numbers = #tpu.dot_dimension_numbers<[1], [0], [0], [1], [0, 0, 1, 1], [], []>} : vector<4x256xf32>, vector<256x128xf32>, vector<4x128xf32> -> vector<4x128xf32>
    %6 = arith.addf %5, %1 : vector<4x128xf32>
    %c0_8 = arith.constant 0 : index
    %c0_9 = arith.constant 0 : index
    %c0_10 = arith.constant 0 : index
    %7 = vector.load %arg5[%c0_8, %c0_9, %c0_10] : memref<1x5x128xf32, #tpu.memory_space<vmem>>, vector<1x4x128xf32>
    %8 = vector.shape_cast %7 : vector<1x4x128xf32> to vector<4x128xf32>
    %9 = vector.shape_cast %6 : vector<4x128xf32> to vector<1x4x128xf32>
    tpu.vector_store %arg5[%c0_8, %c0_9, %c0_10], %9 {strides = array<i32>} : memref<1x5x128xf32, #tpu.memory_space<vmem>>, vector<1x4x128xf32>,
    %c0_11 = arith.constant 0 : index
    %c4 = arith.constant 4 : index
    %c0_12 = arith.constant 0 : index
    %10 = vector.load %arg5[%c0_11, %c4, %c0_12] : memref<1x5x128xf32, #tpu.memory_space<vmem>>, vector<1x1x128xf32>
    %11 = vector.shape_cast %10 : vector<1x1x128xf32> to vector<1x128xf32>
    %12 = vector.shape_cast %2 : vector<1x128xf32> to vector<1x1x128xf32>
    tpu.vector_store %arg5[%c0_11, %c4, %c0_12], %12 {strides = array<i32>} : memref<1x5x128xf32, #tpu.memory_space<vmem>>, vector<1x1x128xf32>,
    return
  }
  func.func @transform_0(%arg0: i32) -> (i32, i32, i32) {
    %c0_i32 = arith.constant 0 : i32
    %c0_i32_0 = arith.constant 0 : i32
    %c0_i32_1 = arith.constant 0 : i32
    return %arg0, %c0_i32, %c0_i32_0 : i32, i32, i32
  }
  func.func @transform_1(%arg0: i32) -> (i32, i32) {
    %c0_i32 = arith.constant 0 : i32
    %c0_i32_0 = arith.constant 0 : i32
    %c0_i32_1 = arith.constant 0 : i32
    return %c0_i32, %c0_i32_0 : i32, i32
  }
  func.func @transform_2(%arg0: i32) -> (i32, i32) {
    %c0_i32 = arith.constant 0 : i32
    %c0_i32_0 = arith.constant 0 : i32
    %c0_i32_1 = arith.constant 0 : i32
    return %c0_i32, %c0_i32_0 : i32, i32
  }
  func.func @transform_3(%arg0: i32) -> (i32, i32) {
    %c0_i32 = arith.constant 0 : i32
    %c0_i32_0 = arith.constant 0 : i32
    %c0_i32_1 = arith.constant 0 : i32
    return %c0_i32, %c0_i32_0 : i32, i32
  }
  func.func @transform_4(%arg0: i32) -> (i32, i32, i32) {
    %c0_i32 = arith.constant 0 : i32
    %c0_i32_0 = arith.constant 0 : i32
    %c0_i32_1 = arith.constant 0 : i32
    return %arg0, %c0_i32, %c0_i32_0 : i32, i32, i32
  }
}

</mosaic_0001>

<llo_original>
// kernel: tpu_custom_call.1
$region0: #{tpu_custom_call.1}
  #allocation0 [shape = 'u32[]', space=smem, size = 0x4, offset = 0x4, fixed_abs, tag = 'smem constant byte address 0x4 - core index']
  #allocation1 [shape = 'u32[144,128]{1,0:T(1,128)}', space=vmem, size = 0x12000, scoped, tag = 'internal scratch']
  %s0 = inlined_call_operand.hbm [shape: f32[2,4,256], index: 0, kind: input, shape index: {}]
  %s1 = inlined_call_operand.hbm [shape: f32[256,128], index: 1, kind: input, shape index: {}]
  %s2 = inlined_call_operand.vmem [shape: f32[4,128], index: 2, kind: input, shape index: {}]
  %s3 = inlined_call_operand.vmem [shape: f32[1,128], index: 3, kind: input, shape index: {}]
  %s4 = inlined_call_operand.vmem [shape: f32[2,5,128], index: 4, kind: output, shape index: {}]
  %s5 = sld [smem:[#allocation0]]
  $region57: #{tpu_custom_call.1} parent=0
    _
  %s7 = ssub.s32 1, %s5
  %s8 = scalar_select 0, %s7, %s5
  $region1: #{tpu_custom_call.1} parent=0
    #allocation2 [shape = 'u8[8192]{0}', space=vmem, size = 0x2000, scoped, tag = 'input window, operand 0']
    #allocation3 [shape = 's32[2]{0}', space=sflag, size = 0x8, scoped, tag = 'scoped memory for tpu_custom_call.1']
    #allocation4 [shape = 'u8[131072]{0}', space=vmem, size = 0x20000, scoped, tag = 'input window, operand 1, single buffered']
    #allocation5 [shape = 's32[1]{0}', space=sflag, size = 0x4, scoped, tag = 'scoped memory for tpu_custom_call.1']
    %9 = vsyncpa [#allocation3], 0
    %s10 = scalar_lea.sflag [#allocation3], 1
    %11 = vsyncpa %s10, 0
    %12 = vsyncpa [#allocation5], 0
    loop: start=0, step=1, limit=4
    $region2: #{tpu_custom_call.1} parent=1 // loop_pre_header
      _
    $region3: #{tpu_custom_call.1} parent=1 // loop_header
      %s14 = sphi 0, %s18
      %p15 = scmp.ge.s32.totalorder %s14, 4
      %s24 = sphi 0, %s26
      %s27 = sphi 0, %s24
      %s28 = sphi 0, %s27
      %s44 = sphi 0, %s28
      %s48 = sphi 0, %s48
      %s50 = sphi 0, %s48
      %s51 = sphi 0, %s50
      %s65 = sphi 0, %s51
      %s69 = sphi 0, %s69
      %s71 = sphi 0, %s69
      %s72 = sphi 0, %s71
      %s86 = sphi 0, %s72
      %s90 = sphi 0, %s90
      %s92 = sphi 0, %s90
      %s93 = sphi 0, %s92
      %s107 = sphi 0, %s93
      %s113 = sphi 0, %s115
      %s116 = sphi 0, %s113
      %s117 = sphi 0, %s116
      %s133 = sphi 0, %s117
    $region4: #{tpu_custom_call.1} parent=1 // loop_header_branch
      %17 = sbr.rel (%p15) target = $region8
    $region5: #{tpu_custom_call.1} parent=1 // loop_body
      %s19 = ssub.s32 %s14, 1
      %s20 = ssub.s32 %s14, 2
      %s21 = sadd.s32 %s14, 1
      %s22 = ssub.s32 %s14, %s21
      %p23 = scmp.eq.s32.totalorder %s22, 0
      %s25 = sadd.s32 %s24, 1
      %s26 = scalar_select %p23, %s24, %s25
      %p29 = pneg %p23
      %p30 = scmp.eq.s32.totalorder %s14, 1
      %p31 = por %p29, %p30
      %p32 = scmp.ne.s32.totalorder %s24, %s27
      %p33 = scmp.eq.s32.totalorder %s14, 0
      %p34 = por %p32, %p33
      %p35 = scmp.ne.s32.totalorder %s24, %s27
      %p36 = scmp.eq.s32.totalorder %s19, 1
      %p37 = por %p35, %p36
      %p38 = scmp.ne.s32.totalorder %s27, %s28
      %p39 = scmp.eq.s32.totalorder %s19, 0
      %p40 = por %p38, %p39
      %p41 = scmp.ne.s32.totalorder %s27, %s28
      %p42 = scmp.eq.s32.totalorder %s20, 1
      %p43 = por %p41, %p42
      %p45 = scmp.ne.s32.totalorder %s28, %s44
      %p46 = scmp.eq.s32.totalorder %s20, 0
      %p47 = por %p45, %p46
      %s49 = sadd.s32 %s48, 1
      %p52 = scmp.eq.s32.totalorder %s14, 1
      %p53 = scmp.ne.s32.totalorder %s48, %s50
      %p54 = scmp.eq.s32.totalorder %s14, 0
      %p55 = por %p53, %p54
      %p56 = scmp.ne.s32.totalorder %s48, %s50
      %p57 = scmp.eq.s32.totalorder %s19, 1
      %p58 = por %p56, %p57
      %p59 = scmp.ne.s32.totalorder %s50, %s51
      %p60 = scmp.eq.s32.totalorder %s19, 0
      %p61 = por %p59, %p60
      %p62 = scmp.ne.s32.totalorder %s50, %s51
      %p63 = scmp.eq.s32.totalorder %s20, 1
      %p64 = por %p62, %p63
      %p66 = scmp.ne.s32.totalorder %s51, %s65
      %p67 = scmp.eq.s32.totalorder %s20, 0
      %p68 = por %p66, %p67
      %s70 = sadd.s32 %s69, 1
      %p73 = scmp.eq.s32.totalorder %s14, 1
      %p74 = scmp.ne.s32.totalorder %s69, %s71
      %p75 = scmp.eq.s32.totalorder %s14, 0
      %p76 = por %p74, %p75
      %p77 = scmp.ne.s32.totalorder %s69, %s71
      %p78 = scmp.eq.s32.totalorder %s19, 1
      %p79 = por %p77, %p78
      %p80 = scmp.ne.s32.totalorder %s71, %s72
      %p81 = scmp.eq.s32.totalorder %s19, 0
      %p82 = por %p80, %p81
      %p83 = scmp.ne.s32.totalorder %s71, %s72
      %p84 = scmp.eq.s32.totalorder %s20, 1
      %p85 = por %p83, %p84
      %p87 = scmp.ne.s32.totalorder %s72, %s86
      %p88 = scmp.eq.s32.totalorder %s20, 0
      %p89 = por %p87, %p88
      %s91 = sadd.s32 %s90, 1
      %p94 = scmp.eq.s32.totalorder %s14, 1
      %p95 = scmp.ne.s32.totalorder %s90, %s92
      %p96 = scmp.eq.s32.totalorder %s14, 0
      %p97 = por %p95, %p96
      %p98 = scmp.ne.s32.totalorder %s90, %s92
      %p99 = scmp.eq.s32.totalorder %s19, 1
      %p100 = por %p98, %p99
      %p101 = scmp.ne.s32.totalorder %s92, %s93
      %p102 = scmp.eq.s32.totalorder %s19, 0
      %p103 = por %p101, %p102
      %p104 = scmp.ne.s32.totalorder %s92, %s93
      %p105 = scmp.eq.s32.totalorder %s20, 1
      %p106 = por %p104, %p105
      %p108 = scmp.ne.s32.totalorder %s93, %s107
      %p109 = scmp.eq.s32.totalorder %s20, 0
      %p110 = por %p108, %p109
      %s111 = ssub.s32 %s14, %s21
      %p112 = scmp.eq.s32.totalorder %s111, 0
      %s114 = sadd.s32 %s113, 1
      %s115 = scalar_select %p112, %s113, %s114
      %p118 = pneg %p112
      %p119 = scmp.eq.s32.totalorder %s14, 1
      %p120 = por %p118, %p119
      %p121 = scmp.ne.s32.totalorder %s113, %s116
      %p122 = scmp.eq.s32.totalorder %s14, 0
      %p123 = por %p121, %p122
      %p124 = scmp.ne.s32.totalorder %s113, %s116
      %p125 = scmp.eq.s32.totalorder %s19, 1
      %p126 = por %p124, %p125
      %p127 = scmp.ne.s32.totalorder %s116, %s117
      %p128 = scmp.eq.s32.totalorder %s19, 0
      %p129 = por %p127, %p128
      %p130 = scmp.ne.s32.totalorder %s116, %s117
      %p131 = scmp.eq.s32.totalorder %s20, 1
      %p132 = por %p130, %p131
      %p134 = scmp.ne.s32.totalorder %s117, %s133
      %p135 = scmp.eq.s32.totalorder %s20, 0
      %p136 = por %p134, %p135
      %p137 = scmp.le.s32.totalorder 1, %s14
      %p138 = scmp.lt.s32.totalorder %s14, 3
      %p139 = pnand %p137, %p138
      %p140 = pneg %p139
      // Predicated region
      $region9: #{tpu_custom_call.1} parent=5 // pred_check
        _
      $region10: #{tpu_custom_call.1} parent=5 // pred_check_branch
        %142 = sbr.rel (%p139) target = $region12
      $region11: #{tpu_custom_call.1} parent=5 // pred_region
        %s143 = ssub.s32 %s14, 1
        // Predicated region
        $region13: #{tpu_custom_call.1} parent=11 // pred_check
          %p144 = pneg %p61
        $region14: #{tpu_custom_call.1} parent=11 // pred_check_branch
          %146 = sbr.rel (%p144) target = $region16
        $region15: #{tpu_custom_call.1} parent=11 // pred_region
          %s148 = ssub.s32 4096, 4096
          %149 = vsyncadd [#allocation5], %s148
          %s150 = sshll.u32 [#allocation4], 4
          %s151 = int_to_ptr.vmem [resolvable:$true] %s150
          %156 = dma.hbm_to_vmem [thread:$0]  %s1, 4096, %s151, [#allocation5], 128, 128, 8
        $region16: #{tpu_custom_call.1} parent=11 // pred_fallthru
          _
        // Predicated region
        $region17: #{tpu_custom_call.1} parent=11 // pred_check
          %p157 = pneg %p82
        $region18: #{tpu_custom_call.1} parent=11 // pred_check_branch
          %159 = sbr.rel (%p157) target = $region20
        $region19: #{tpu_custom_call.1} parent=11 // pred_region
          _
        $region20: #{tpu_custom_call.1} parent=11 // pred_fallthru
          _
        // Predicated region
        $region21: #{tpu_custom_call.1} parent=11 // pred_check
          %p160 = pneg %p103
        $region22: #{tpu_custom_call.1} parent=11 // pred_check_branch
          %162 = sbr.rel (%p160) target = $region24
        $region23: #{tpu_custom_call.1} parent=11 // pred_region
          _
        $region24: #{tpu_custom_call.1} parent=11 // pred_fallthru
          _
      $region12: #{tpu_custom_call.1} parent=5 // pred_fallthru
        _
      %p163 = scmp.lt.s32.totalorder %s14, 2
      // Predicated region
      $region25: #{tpu_custom_call.1} parent=5 // pred_check
        %p164 = pneg %p163
      $region26: #{tpu_custom_call.1} parent=5 // pred_check_branch
        %166 = sbr.rel (%p164) target = $region28
      $region27: #{tpu_custom_call.1} parent=5 // pred_region
        // Predicated region
        $region29: #{tpu_custom_call.1} parent=27 // pred_check
          %p167 = pneg %p34
        $region30: #{tpu_custom_call.1} parent=27 // pred_check_branch
          %169 = sbr.rel (%p167) target = $region32
        $region31: #{tpu_custom_call.1} parent=27 // pred_region
          %s170 = sand.u32 %s24, 1
          %s171 = scalar_lea.sflag [#allocation3], %s170
          %s172 = sand.u32 %s24, 1
          %s173 = smul.addr %s172, 8
          %s174 = scalar_lea.vmem [#allocation2], %s173
          %s176 = ssub.s32 128, 128
          %177 = vsyncadd %s171, %s176
          %s178 = smul.addr %s14, 2
          %s179 = smul.addr %s178, 64
          %s180 = scalar_lea.hbm %s0, %s179
          %s182 = sshll.u32 %s174, 4
          %s183 = int_to_ptr.vmem [resolvable:$true] %s182
          %185 = dma.hbm_to_vmem [thread:$0]  %s180, 128, %s183, %s171
        $region32: #{tpu_custom_call.1} parent=27 // pred_fallthru
          _
      $region28: #{tpu_custom_call.1} parent=5 // pred_fallthru
        _
      %p186 = scmp.le.s32.totalorder 1, %s14
      %p187 = scmp.lt.s32.totalorder %s14, 3
      %p188 = pnand %p186, %p187
      %p189 = pneg %p188
      // Predicated region
      $region33: #{tpu_custom_call.1} parent=5 // pred_check
        _
      $region34: #{tpu_custom_call.1} parent=5 // pred_check_branch
        %191 = sbr.rel (%p188) target = $region36
      $region35: #{tpu_custom_call.1} parent=5 // pred_region
        %s192 = ssub.s32 %s14, 1
        %s193 = sand.u32 %s27, 1
        %s194 = scalar_lea.sflag [#allocation3], %s193
        %s195 = sand.u32 %s27, 1
        %s196 = smul.addr %s195, 8
        %s197 = scalar_lea.vmem [#allocation2], %s196
        // Predicated region
        $region37: #{tpu_custom_call.1} parent=35 // pred_check
          %p198 = pneg %p40
        $region38: #{tpu_custom_call.1} parent=35 // pred_check_branch
          %200 = sbr.rel (%p198) target = $region40
        $region39: #{tpu_custom_call.1} parent=35 // pred_region
          %201 = dma.done %s194, 128
        $region40: #{tpu_custom_call.1} parent=35 // pred_fallthru
          _
        // Predicated region
        $region41: #{tpu_custom_call.1} parent=35 // pred_check
          %p202 = pneg %p61
        $region42: #{tpu_custom_call.1} parent=35 // pred_check_branch
          %204 = sbr.rel (%p202) target = $region44
        $region43: #{tpu_custom_call.1} parent=35 // pred_region
          %205 = dma.done [#allocation5], 4096
        $region44: #{tpu_custom_call.1} parent=35 // pred_fallthru
          _
        %s206 = sand.u32 %s27, 1
        %s207 = scalar_lea.sflag [#allocation3], %s206
        %s208 = sand.u32 %s27, 1
        %s209 = smul.addr %s208, 8
        %s210 = scalar_lea.vmem [#allocation2], %s209
        %p211 = pneg %p40
        %p212 = pneg %p37
        %p213 = pneg %p61
        %p214 = pneg %p58
        %p215 = pneg %p82
        %p216 = pneg %p79
        %p217 = pneg %p103
        %p218 = pneg %p100
        %p219 = pneg %p129
        %p220 = pneg %p126
        %p221 = scmp.lt.s32.totalorder %s19, 1
        %s222 = scalar_select %p221, %s19, 1
        %s223 = smul.addr %s222, 8
        %s224 = scalar_lea.vmem %s4, %s223
        %p225 = scmp.lt.s32.totalorder %s19, 1
        %s226 = scalar_select %p225, %s19, 1
        %s227 = smul.addr %s226, 8
        %s228 = scalar_lea.vmem %s4, %s227
        %v229 = vld [vmem:[#allocation4] sm:$0xff]
        %v230 = vld [vmem:[#allocation4 + $0x8] sm:$0xff]
        %v231 = vld [vmem:[#allocation4 + $0x10] sm:$0xff]
        %v232 = vld [vmem:[#allocation4 + $0x18] sm:$0xff]
        %v233 = vld [vmem:[#allocation4 + $0x20] sm:$0xff]
        %v234 = vld [vmem:[#allocation4 + $0x28] sm:$0xff]
        %v235 = vld [vmem:[#allocation4 + $0x30] sm:$0xff]
        %v236 = vld [vmem:[#allocation4 + $0x38] sm:$0xff]
        %v237 = vld [vmem:[#allocation4 + $0x40] sm:$0xff]
        %v238 = vld [vmem:[#allocation4 + $0x48] sm:$0xff]
        %v239 = vld [vmem:[#allocation4 + $0x50] sm:$0xff]
        %v240 = vld [vmem:[#allocation4 + $0x58] sm:$0xff]
        %v241 = vld [vmem:[#allocation4 + $0x60] sm:$0xff]
        %v242 = vld [vmem:[#allocation4 + $0x68] sm:$0xff]
        %v243 = vld [vmem:[#allocation4 + $0x70] sm:$0xff]
        %v244 = vld [vmem:[#allocation4 + $0x78] sm:$0xff]
        %v245 = vld [vmem:[#allocation4 + $0x80] sm:$0xff]
        %v246 = vld [vmem:[#allocation4 + $0x88] sm:$0xff]
        %v247 = vld [vmem:[#allocation4 + $0x90] sm:$0xff]
        %v248 = vld [vmem:[#allocation4 + $0x98] sm:$0xff]
        %v249 = vld [vmem:[#allocation4 + $0xa0] sm:$0xff]
        %v250 = vld [vmem:[#allocation4 + $0xa8] sm:$0xff]
        %v251 = vld [vmem:[#allocation4 + $0xb0] sm:$0xff]
        %v252 = vld [vmem:[#allocation4 + $0xb8] sm:$0xff]
        %v253 = vld [vmem:[#allocation4 + $0xc0] sm:$0xff]
        %v254 = vld [vmem:[#allocation4 + $0xc8] sm:$0xff]
        %v255 = vld [vmem:[#allocation4 + $0xd0] sm:$0xff]
        %v256 = vld [vmem:[#allocation4 + $0xd8] sm:$0xff]
        %v257 = vld [vmem:[#allocation4 + $0xe0] sm:$0xff]
        %v258 = vld [vmem:[#allocation4 + $0xe8] sm:$0xff]
        %v259 = vld [vmem:[#allocation4 + $0xf0] sm:$0xff]
        %v260 = vld [vmem:[#allocation4 + $0xf8] sm:$0xff]
        %v261 = vld [vmem:[%s2] sm:$0xf]
        %v262 = vld [vmem:[%s3] sm:$0x1]
        %v263 = vld [vmem:[%s197] sm:$0xff]
        %v265 = vcombine.high %v263, %v263
        %267 = vmatprep.subr.mxu0 0.0
        %268 = vmatpush1.msra.mxu0 %v229
        %269 = vmatprep.subr.mxu0 0.0
        %270 = vmatpush1.msra.mxu0 %v230
        %271 = vmatprep.subr.mxu0 0.0
        %272 = vmatpush1.msra.mxu0 %v231
        %273 = vmatprep.subr.mxu0 0.0
        %274 = vmatpush1.msra.mxu0 %v232
        %275 = vmatprep.subr.mxu0 0.0
        %276 = vmatpush1.msra.mxu0 %v233
        %277 = vmatprep.subr.mxu0 0.0
        %278 = vmatpush1.msra.mxu0 %v234
        %279 = vmatprep.subr.mxu0 0.0
        %280 = vmatpush1.msra.mxu0 %v235
        %281 = vmatprep.subr.mxu0 0.0
        %282 = vmatpush1.msra.mxu0 %v236
        %283 = vmatprep.subr.mxu0 0.0
        %284 = vmatpush1.msra.mxu0 %v237
        %285 = vmatprep.subr.mxu0 0.0
        %286 = vmatpush1.msra.mxu0 %v238
        %287 = vmatprep.subr.mxu0 0.0
        %288 = vmatpush1.msra.mxu0 %v239
        %289 = vmatprep.subr.mxu0 0.0
        %290 = vmatpush1.msra.mxu0 %v240
        %291 = vmatprep.subr.mxu0 0.0
        %292 = vmatpush1.msra.mxu0 %v241
        %293 = vmatprep.subr.mxu0 0.0
        %294 = vmatpush1.msra.mxu0 %v242
        %295 = vmatprep.subr.mxu0 0.0
        %296 = vmatpush1.msra.mxu0 %v243
        %297 = vmatprep.subr.mxu0 0.0
        %298 = vmatpush1.msra.mxu0 %v244
        %299 = vmatprep.subr.mxu0 0.0
        %300 = vmatpush1.msra.mxu0 %v245
        %301 = vmatprep.subr.mxu0 0.0
        %302 = vmatpush1.msra.mxu0 %v246
        %303 = vmatprep.subr.mxu0 0.0
        %304 = vmatpush1.msra.mxu0 %v247
        %305 = vmatprep.subr.mxu0 0.0
        %306 = vmatpush1.msra.mxu0 %v248
        %307 = vmatprep.subr.mxu0 0.0
        %308 = vmatpush1.msra.mxu0 %v249
        %309 = vmatprep.subr.mxu0 0.0
        %310 = vmatpush1.msra.mxu0 %v250
        %311 = vmatprep.subr.mxu0 0.0
        %312 = vmatpush1.msra.mxu0 %v251
        %313 = vmatprep.subr.mxu0 0.0
        %314 = vmatpush1.msra.mxu0 %v252
        %315 = vmatprep.subr.mxu0 0.0
        %316 = vmatpush1.msra.mxu0 %v253
        %317 = vmatprep.subr.mxu0 0.0
        %318 = vmatpush1.msra.mxu0 %v254
        %319 = vmatprep.subr.mxu0 0.0
        %320 = vmatpush1.msra.mxu0 %v255
        %321 = vmatprep.subr.mxu0 0.0
        %322 = vmatpush1.msra.mxu0 %v256
        %323 = vmatprep.subr.mxu0 0.0
        %324 = vmatpush1.msra.mxu0 %v257
        %325 = vmatprep.subr.mxu0 0.0
        %326 = vmatpush1.msra.mxu0 %v258
        %327 = vmatprep.subr.mxu0 0.0
        %328 = vmatpush1.msra.mxu0 %v259
        %329 = vmatprep.subr.mxu0 0.0
        %330 = vmatpush1.msra.mxu0 %v260
        %331 = vmatprep.mubr.f32.mxu0 %v265
        %332 = vmatmul.mubr.f32.gmra.mrb[0].mxu0 %v263
        %v333 = vpop.f32.mrb[0].mxu0
        %v334 = vadd.f32 %v261, %v333
        %v335 = vpop.f32.mrb[0].mxu0
        %336 = vdwg.mxu0
        %337 = vst [vmem:[%s228] sm:$0xf] %v334
        %338 = vst [vmem:[%s228 + $0x4] sm:$0x1] %v262
        %p339 = scmp.lt.s32.totalorder %s19, 1
        %s340 = scalar_select %p339, %s19, 1
        %s341 = smul.addr %s340, 8
        %s342 = scalar_lea.vmem %s4, %s341
        // Predicated region
        $region45: #{tpu_custom_call.1} parent=35 // pred_check
          %p343 = pneg %p126
        $region46: #{tpu_custom_call.1} parent=35 // pred_check_branch
          %345 = sbr.rel (%p343) target = $region48
        $region47: #{tpu_custom_call.1} parent=35 // pred_region
          _
        $region48: #{tpu_custom_call.1} parent=35 // pred_fallthru
          _
      $region36: #{tpu_custom_call.1} parent=5 // pred_fallthru
        _
      %p346 = scmp.le.s32.totalorder 2, %s14
      // Predicated region
      $region49: #{tpu_custom_call.1} parent=5 // pred_check
        %p347 = pneg %p346
      $region50: #{tpu_custom_call.1} parent=5 // pred_check_branch
        %349 = sbr.rel (%p347) target = $region52
      $region51: #{tpu_custom_call.1} parent=5 // pred_region
        %s350 = ssub.s32 %s14, 2
        // Predicated region
        $region53: #{tpu_custom_call.1} parent=51 // pred_check
          %p351 = pneg %p132
        $region54: #{tpu_custom_call.1} parent=51 // pred_check_branch
          %353 = sbr.rel (%p351) target = $region56
        $region55: #{tpu_custom_call.1} parent=51 // pred_region
          %p354 = scmp.lt.s32.totalorder %s20, 1
          %s355 = scalar_select %p354, %s20, 1
          %s356 = smul.addr %s355, 8
          %s357 = scalar_lea.vmem %s4, %s356
        $region56: #{tpu_custom_call.1} parent=51 // pred_fallthru
          _
      $region52: #{tpu_custom_call.1} parent=5 // pred_fallthru
        _
    $region6: #{tpu_custom_call.1} parent=1 // loop_footer
      %s18 = sadd.s32 1, %s14
    $region7: #{tpu_custom_call.1} parent=1 // loop_footer_branch
      %13 = sbr.rel target = $region3
    $region8: #{tpu_custom_call.1} parent=1 // loop_exit
      _
    %358 = vsyncpa [#allocation3], 1
    %s359 = scalar_lea.sflag [#allocation3], 1
    %360 = vsyncpa %s359, 1
    %361 = vsyncpa [#allocation5], 1

</llo_original>
